<compile_context>
chip_gen: v6e
topology: v6e:2x2x1
jax: 0.10.0
libtpu: 0.0.40
codegen_flags: <defaults>
</compile_context>

<pallas_src>
import functools
import math

import jax
import jax.numpy as jnp
import numpy as np
from jax.experimental import pallas as pl
from jax.experimental.pallas import tpu as pltpu

MAX_POSITIONS = 2056        # TimeEmb.max_positions
LN_EPS = 1e-5               # nn.LayerNorm default
# > v5e's 16 MiB default scoped limit, comfortably under v7x's 64 MiB physical VMEM.
VMEM_LIMIT_BYTES = 48 * 1024 * 1024


def _row_tile(n):
    """Largest of (512, 256, 128) that divides n, else the full row count."""
    for t in (512, 256, 128):
        if n % t == 0:
            return t
    return n


def _bf(x):
    return x.astype(jnp.bfloat16)


def _ln(x, g, b):
    """LayerNorm over the last axis (biased variance, eps=1e-5), affine, in f32."""
    mu = jnp.mean(x, axis=-1, keepdims=True)
    var = jnp.mean(jnp.square(x - mu), axis=-1, keepdims=True)
    return (x - mu) * jax.lax.rsqrt(var + LN_EPS) * g + b


# --------------------------------------------------------------------------------------
# Kernel 1: inp_embedding + feat_mixer (pos/time contributions folded into bias_ref rows)
# --------------------------------------------------------------------------------------
def _embed_mix_kernel(x_ref, bias_ref, w_in_ref, b_in_ref, w_m1t_ref, w_m2_ref, b_m2_ref,
                      o_ref):
    e = jnp.dot(_bf(x_ref[...]), w_in_ref[...],
                preferred_element_type=jnp.float32) + b_in_ref[...]
    h = jnp.dot(_bf(e), w_m1t_ref[...],
                preferred_element_type=jnp.float32) + bias_ref[...]
    h = jnp.maximum(h, 0.0)                                            # ReLU
    o_ref[...] = jnp.dot(_bf(h), w_m2_ref[...],
                         preferred_element_type=jnp.float32) + b_m2_ref[...]


# --------------------------------------------------------------------------------------
# Kernel 2: fused stack of post-norm TransformerEncoderLayers, grid = (batch, layer)
# --------------------------------------------------------------------------------------
def _encoder_stack_kernel(x_in_ref, wqkv_ref, bqkv_ref, wo_ref, bo_ref,
                          ln1g_ref, ln1b_ref, w1_ref, b1_ref, w2_ref, b2_ref,
                          ln2g_ref, ln2b_ref, o_ref, x_vmem, attn_vmem, *, nhead):
    l = pl.program_id(1)

    @pl.when(l == 0)
    def _():                                  # new batch element: load activation once
        x_vmem[...] = x_in_ref[0]

    x = x_vmem[...]                           # [S, d] f32, resident across the layer axis
    d = x.shape[-1]
    dh = d // nhead
    scale = 1.0 / math.sqrt(dh)

    # Single MXU-friendly QKV projection (K=d, N=3d).
    qkv = jnp.dot(_bf(x), wqkv_ref[0], preferred_element_type=jnp.float32) + bqkv_ref[0]
    q = qkv[:, :d] * scale
    k = qkv[:, d:2 * d]
    v = qkv[:, 2 * d:]

    # Per-head softmax(QK^T)V; head outputs land in their column slice of attn_vmem so the
    # output projection below is ONE [S,d]@[d,d] matmul (K=d) instead of nhead K=dh matmuls.
    # TODO(synk): for very long S (v7x, 64 MiB VMEM) tile KV flash-style instead of holding
    # the full [S,S] score matrix per head.
    for h in range(nhead):
        sl = slice(h * dh, (h + 1) * dh)
        s = jax.lax.dot_general(_bf(q[:, sl]), _bf(k[:, sl]),
                                (((1,), (1,)), ((), ())),
                                preferred_element_type=jnp.float32)    # [S, S]
        s = s - jnp.max(s, axis=-1, keepdims=True)
        p = jnp.exp(s)
        p = p * pl.reciprocal(jnp.sum(p, axis=-1, keepdims=True), approx=True)
        attn_vmem[:, sl] = jnp.dot(_bf(p), _bf(v[:, sl]),
                                   preferred_element_type=jnp.float32)  # [S, dh]

    attn = jnp.dot(_bf(attn_vmem[...]), wo_ref[0],
                   preferred_element_type=jnp.float32) + bo_ref[0]

    y = _ln(x + attn, ln1g_ref[0], ln1b_ref[0])                         # post-norm 1
    ff = jnp.maximum(jnp.dot(_bf(y), w1_ref[0],
                             preferred_element_type=jnp.float32) + b1_ref[0], 0.0)
    ff = jnp.dot(_bf(ff), w2_ref[0], preferred_element_type=jnp.float32) + b2_ref[0]
    y = _ln(y + ff, ln2g_ref[0], ln2b_ref[0])                           # post-norm 2

    x_vmem[...] = y            # carry the activation to layer l+1 (stays in VMEM)
    o_ref[0] = y               # HBM write-back happens once per batch element


# --------------------------------------------------------------------------------------
# Kernel 3: output head  Linear -> GELU(exact) -> Linear (ntoken padded to 128 lanes)
# --------------------------------------------------------------------------------------
def _out_head_kernel(x_ref, w1_ref, b1_ref, w2_ref, b2_ref, o_ref):
    h = jnp.dot(_bf(x_ref[...]), w1_ref[...],
                preferred_element_type=jnp.float32) + b1_ref[...]
    h = jax.nn.gelu(h, approximate=False)                               # exact erf GELU
    o_ref[...] = jnp.dot(_bf(h), w2_ref[...],
                         preferred_element_type=jnp.float32) + b2_ref[...]


# --------------------------------------------------------------------------------------
# Wrappers
# --------------------------------------------------------------------------------------
def embed_mix(src, time, params):
    ep = params["embed"]
    B, S, ntoken = src.shape
    d = ep["w_in"].shape[1]
    rows = B * S
    tm = _row_tile(rows)
    hp = jax.lax.Precision.HIGHEST

    # Tiny host-side (plain JAX) precompute: fold the seq-constant and batch-constant parts
    # of the mixer's first matmul into one additive [B*S, d] bias.  This hoists the M=1
    # time-embedding matmuls out of the kernel entirely.
    ang = (time.astype(jnp.float32)[:, None] * MAX_POSITIONS) * params["freqs"]     # [B, d/2]
    temb = jnp.concatenate([jnp.sin(ang), jnp.cos(ang)], axis=-1)                    # [B, d]
    pos_part = jnp.dot(params["pos"], ep["w_m1_top"].astype(jnp.float32), precision=hp)
    temb_part = jnp.dot(temb, ep["w_m1_bot"], precision=hp)
    m1_bias = (pos_part[None] + temb_part[:, None] + ep["b_m1"][None]).reshape(rows, d)

    x_flat = src.astype(jnp.float32).reshape(rows, ntoken)

    # NOTE: constant-index weight blocks are only fetched once by the pipeline; explicit
    # single-buffering (pl.Buffered(1)) is left out for portability across jax versions.
    out = pl.pallas_call(
        _embed_mix_kernel,
        out_shape=jax.ShapeDtypeStruct((rows, d), jnp.float32),
        grid=(rows // tm,),
        in_specs=[
            pl.BlockSpec((tm, ntoken), lambda r: (r, 0)),
            pl.BlockSpec((tm, d), lambda r: (r, 0)),
            pl.BlockSpec((ntoken, d), lambda r: (0, 0)),
            pl.BlockSpec((1, d), lambda r: (0, 0)),
            pl.BlockSpec((d, d), lambda r: (0, 0)),
            pl.BlockSpec((d, d), lambda r: (0, 0)),
            pl.BlockSpec((1, d), lambda r: (0, 0)),
        ],
        out_specs=pl.BlockSpec((tm, d), lambda r: (r, 0)),
        compiler_params=pltpu.CompilerParams(
            dimension_semantics=("parallel",),
            vmem_limit_bytes=VMEM_LIMIT_BYTES),
    )(x_flat, m1_bias, ep["w_in"], ep["b_in"], ep["w_m1_top"], ep["w_m2"], ep["b_m2"])
    return out.reshape(B, S, d)


def encoder_stack(x, lp, nhead):
    B, S, d = x.shape
    L = lp["wqkv"].shape[0]
    kernel = functools.partial(_encoder_stack_kernel, nhead=nhead)

    def wspec(arr):
        return pl.BlockSpec((1,) + arr.shape[1:], lambda b, l: (l, 0, 0))

    names = ("wqkv", "bqkv", "wo", "bo", "ln1_g", "ln1_b",
             "w1", "b1", "w2", "b2", "ln2_g", "ln2_b")
    return pl.pallas_call(
        kernel,
        out_shape=jax.ShapeDtypeStruct((B, S, d), jnp.float32),
        grid=(B, L),                                    # batch outer (megacore), layer inner
        in_specs=[pl.BlockSpec((1, S, d), lambda b, l: (b, 0, 0))]
                 + [wspec(lp[n]) for n in names],
        out_specs=pl.BlockSpec((1, S, d), lambda b, l: (b, 0, 0)),
        scratch_shapes=[pltpu.VMEM((S, d), jnp.float32),    # resident activation
                        pltpu.VMEM((S, d), jnp.float32)],   # concatenated head outputs
        compiler_params=pltpu.CompilerParams(
            dimension_semantics=("parallel", "arbitrary"),
            vmem_limit_bytes=VMEM_LIMIT_BYTES),
    )(x, *[lp[n] for n in names])


def out_head(x, op):
    B, S, d_in = x.shape
    w1 = op["w1"]                       # [d_hid, d_hid]; module assumes d_model == d_hid
    d_hid = w1.shape[1]
    npad = op["w2"].shape[1]            # ntoken rounded up to a multiple of 128
    ntoken = op["ntoken"]
    rows = B * S
    tm = _row_tile(rows)
    x_flat = x.reshape(rows, d_in)

    out = pl.pallas_call(
        _out_head_kernel,
        out_shape=jax.ShapeDtypeStruct((rows, npad), jnp.float32),
        grid=(rows // tm,),
        in_specs=[
            pl.BlockSpec((tm, d_in), lambda r: (r, 0)),
            pl.BlockSpec((w1.shape[0], d_hid), lambda r: (0, 0)),
            pl.BlockSpec((1, d_hid), lambda r: (0, 0)),
            pl.BlockSpec((d_hid, npad), lambda r: (0, 0)),
            pl.BlockSpec((1, npad), lambda r: (0, 0)),
        ],
        out_specs=pl.BlockSpec((tm, npad), lambda r: (r, 0)),
        compiler_params=pltpu.CompilerParams(
            dimension_semantics=("parallel",),
            vmem_limit_bytes=VMEM_LIMIT_BYTES),
    )(x_flat, w1, op["b1"], op["w2"], op["b2"])
    return out[:, :ntoken].reshape(B, S, ntoken)


def seq_transformer_forward(src, time, params, nhead):
    x = embed_mix(src, time, params)
    x = encoder_stack(x, params["layers"], nhead)
    return out_head(x, params["out"])


# --------------------------------------------------------------------------------------
# Parameters: f32 "base" (module layout, weights pre-rounded to bf16 values) + kernel pack
# --------------------------------------------------------------------------------------
def _linear(key, fan_in, fan_out):
    kw, kb = jax.random.split(key)
    bound = 1.0 / math.sqrt(fan_in)
    w = jax.random.uniform(kw, (fan_in, fan_out), jnp.float32, -bound, bound)
    b = jax.random.uniform(kb, (1, fan_out), jnp.float32, -bound, bound)
    # Round weights to bf16-representable values so the bf16 kernel weights and the f32
    # reference share identical parameter values (weights stored pre-transposed [in, out]).
    w = w.astype(jnp.bfloat16).astype(jnp.float32)
    return w, b


def init_params(key, ntoken, d_model, nhead, d_hid, nlayers, seq_len, max_len=1000):
    del nhead  # head count does not change parameter shapes
    keys = jax.random.split(key, 2 + nlayers)

    # PositionalEncoding table (interleaved sin/cos), sliced to seq_len
    pos_idx = jnp.arange(max_len, dtype=jnp.float32)[:, None]
    div = jnp.power(10000.0, jnp.arange(0, d_model, 2, dtype=jnp.float32) / d_model)
    angp = pos_idx / div
    P = jnp.zeros((max_len, d_model), jnp.float32)
    P = P.at[:, 0::2].set(jnp.sin(angp))
    P = P.at[:, 1::2].set(jnp.cos(angp))
    pos = P[:seq_len]

    # TimeEmb frequencies
    half = d_model // 2
    freqs = jnp.exp(jnp.arange(half, dtype=jnp.float32) *
                    (-math.log(MAX_POSITIONS) / (half - 1)))[None, :]

    k_in, k_m1, k_m2 = jax.random.split(keys[0], 3)
    w_in, b_in = _linear(k_in, ntoken, d_model)
    w_m1, b_m1 = _linear(k_m1, 2 * d_model, d_model)
    w_m2, b_m2 = _linear(k_m2, d_model, d_model)
    embed = dict(w_in=w_in, b_in=b_in, w_m1=w_m1, b_m1=b_m1, w_m2=w_m2, b_m2=b_m2)

    layers = []
    for i in range(nlayers):
        k_qkv, k_o, k_1, k_2 = jax.random.split(keys[1 + i], 4)
        wqkv, bqkv = _linear(k_qkv, d_model, 3 * d_model)
        wo, bo = _linear(k_o, d_model, d_model)
        w1, b1 = _linear(k_1, d_model, d_hid)
        w2, b2 = _linear(k_2, d_hid, d_model)
        layers.append(dict(
            wqkv=wqkv, bqkv=bqkv, wo=wo, bo=bo,
            ln1_g=jnp.ones((1, d_model), jnp.float32),
            ln1_b=jnp.zeros((1, d_model), jnp.float32),
            w1=w1, b1=b1, w2=w2, b2=b2,
            ln2_g=jnp.ones((1, d_model), jnp.float32),
            ln2_b=jnp.zeros((1, d_model), jnp.float32)))

    k_o1, k_o2 = jax.random.split(keys[1 + nlayers], 2)
    wo1, bo1 = _linear(k_o1, d_hid, d_hid)
    wo2, bo2 = _linear(k_o2, d_hid, ntoken)
    out = dict(w1=wo1, b1=bo1, w2=wo2, b2=bo2)

    return dict(pos=pos, freqs=freqs, embed=embed, layers=layers, out=out)


def pack_params(base, d_model, ntoken):
    """Kernel layout: bf16 weights, pre-split W_m1, stacked [L,...] layer weights,
    128-lane-padded output head."""
    bf = jnp.bfloat16
    e = base["embed"]
    embed = dict(
        w_in=e["w_in"].astype(bf), b_in=e["b_in"],
        w_m1_top=e["w_m1"][:d_model].astype(bf),   # multiplies (embedding + pos) half
        w_m1_bot=e["w_m1"][d_model:],              # multiplies time-embedding half (wrapper only)
        b_m1=e["b_m1"],
        w_m2=e["w_m2"].astype(bf), b_m2=e["b_m2"])

    weight_names = ("wqkv", "wo", "w1", "w2")
    layers = {}
    for n in ("wqkv", "bqkv", "wo", "bo", "ln1_g", "ln1_b",
              "w1", "b1", "w2", "b2", "ln2_g", "ln2_b"):
        arr = jnp.stack([lp[n] for lp in base["layers"]], axis=0)
        layers[n] = arr.astype(bf) if n in weight_names else arr

    o = base["out"]
    npad = ((ntoken + 127) // 128) * 128
    w2p = jnp.zeros((o["w2"].shape[0], npad), jnp.float32).at[:, :ntoken].set(o["w2"])
    b2p = jnp.zeros((1, npad), jnp.float32).at[:, :ntoken].set(o["b2"])
    out = dict(w1=o["w1"].astype(bf), b1=o["b1"], w2=w2p.astype(bf), b2=b2p, ntoken=ntoken)

    return dict(pos=base["pos"], freqs=base["freqs"], embed=embed, layers=layers, out=out)


# --------------------------------------------------------------------------------------
# Pure-JAX reference (mirrors the PyTorch forward, f32 HIGHEST precision)
# --------------------------------------------------------------------------------------
def reference_forward(src, time, params, nhead):
    hp = jax.lax.Precision.HIGHEST
    p = params["embed"]
    B, S, _ = src.shape
    d = p["w_in"].shape[1]
    e = jnp.einsum("bsk,kd->bsd", src, p["w_in"], precision=hp) + p["b_in"]
    e = e + params["pos"][None]
    ang = (time[:, None] * MAX_POSITIONS) * params["freqs"][0][None, :]
    temb = jnp.concatenate([jnp.sin(ang), jnp.cos(ang)], axis=-1)          # [B, d]
    cat = jnp.concatenate([e, jnp.broadcast_to(temb[:, None, :], (B, S, d))], axis=-1)
    h = jnp.maximum(jnp.einsum("bsk,kd->bsd", cat, p["w_m1"], precision=hp) + p["b_m1"], 0.0)
    x = jnp.einsum("bsk,kd->bsd", h, p["w_m2"], precision=hp) + p["b_m2"]
    dh = d // nhead
    for lp in params["layers"]:
        qkv = jnp.einsum("bsk,kd->bsd", x, lp["wqkv"], precision=hp) + lp["bqkv"]
        q, k, v = qkv[..., :d], qkv[..., d:2 * d], qkv[..., 2 * d:]
        q = q.reshape(B, S, nhead, dh)
        k = k.reshape(B, S, nhead, dh)
        v = v.reshape(B, S, nhead, dh)
        s = jnp.einsum("bqhd,bkhd->bhqk", q, k, precision=hp) / math.sqrt(dh)
        pattn = jax.nn.softmax(s, axis=-1)
        o = jnp.einsum("bhqk,bkhd->bqhd", pattn, v, precision=hp).reshape(B, S, d)
        attn = jnp.einsum("bsk,kd->bsd", o, lp["wo"], precision=hp) + lp["bo"]
        x = _ln(x + attn, lp["ln1_g"], lp["ln1_b"])
        ff = jnp.maximum(jnp.einsum("bsk,kd->bsd", x, lp["w1"], precision=hp) + lp["b1"], 0.0)
        ff = jnp.einsum("bsk,kd->bsd", ff, lp["w2"], precision=hp) + lp["b2"]
        x = _ln(x + ff, lp["ln2_g"], lp["ln2_b"])
    op = params["out"]
    h = jnp.einsum("bsk,kd->bsd", x, op["w1"], precision=hp) + op["b1"]
    h = jax.nn.gelu(h, approximate=False)
    return jnp.einsum("bsk,kd->bsd", h, op["w2"], precision=hp) + op["b2"]


if __name__ == "__main__":
    # Small shapes consistent with the module (scaled down from 256/8/12 defaults)
    B, S = 2, 8
    NTOKEN, D_MODEL, NHEAD, D_HID, NLAYERS = 16, 32, 4, 32, 2

    key = jax.random.PRNGKey(0)
    kp, ks, kt = jax.random.split(key, 3)
    base = init_params(kp, NTOKEN, D_MODEL, NHEAD, D_HID, NLAYERS, seq_len=S)
    params = pack_params(base, D_MODEL, NTOKEN)

    src = jax.random.normal(ks, (B, S, NTOKEN), jnp.float32)   # [batch, seq, ntoken]
    time = jax.random.uniform(kt, (B,), jnp.float32)           # [batch]

    out = seq_transformer_forward(src, time, params, NHEAD)
    out = jax.block_until_ready(out)
    assert out.shape == (B, S, NTOKEN), out.shape

    # Kernels use bf16 MXU operands (f32 accumulation) and an approx EUP reciprocal in the
    # softmax; the reference is full-f32 HIGHEST precision, hence the bf16-appropriate tolerance.
    ref = reference_forward(src, time, base, NHEAD)
    np.testing.assert_allclose(np.asarray(out), np.asarray(ref), atol=5e-2, rtol=5e-2)

    print("KERNEL_OK")
</pallas_src>

<mosaic_0001>
module attributes {stable_mosaic.version = 11 : i64} {
  func.func @_embed_mix_kernel(%arg0: i32, %arg1: memref<16x16xf32, #tpu.memory_space<vmem>>, %arg2: memref<16x32xf32, #tpu.memory_space<vmem>>, %arg3: memref<16x32xbf16, #tpu.memory_space<vmem>>, %arg4: memref<1x32xf32, #tpu.memory_space<vmem>>, %arg5: memref<32x32xbf16, #tpu.memory_space<vmem>>, %arg6: memref<32x32xbf16, #tpu.memory_space<vmem>>, %arg7: memref<1x32xf32, #tpu.memory_space<vmem>>, %arg8: memref<16x32xf32, #tpu.memory_space<vmem>>) attributes {dimension_semantics = [#tpu.dimension_semantics<parallel>], iteration_bounds = array<i64: 1>, scalar_prefetch = 0 : i64, scratch_operands = 0 : i64, tpu.core_type = #tpu.core_type<tc>, window_params = [{transform_indices = @transform_0, window_bounds = array<i64: 16, 16>}, {transform_indices = @transform_1, window_bounds = array<i64: 16, 32>}, {pipeline_mode = #tpu.pipeline_mode<synchronous>, transform_indices = @transform_2, window_bounds = array<i64: 16, 32>}, {pipeline_mode = #tpu.pipeline_mode<synchronous>, transform_indices = @transform_3, window_bounds = array<i64: 1, 32>}, {pipeline_mode = #tpu.pipeline_mode<synchronous>, transform_indices = @transform_4, window_bounds = array<i64: 32, 32>}, {pipeline_mode = #tpu.pipeline_mode<synchronous>, transform_indices = @transform_5, window_bounds = array<i64: 32, 32>}, {pipeline_mode = #tpu.pipeline_mode<synchronous>, transform_indices = @transform_6, window_bounds = array<i64: 1, 32>}, {transform_indices = @transform_7, window_bounds = array<i64: 16, 32>}]} {
    %c0 = arith.constant 0 : index
    %c0_0 = arith.constant 0 : index
    %0 = vector.load %arg1[%c0, %c0_0] : memref<16x16xf32, #tpu.memory_space<vmem>>, vector<16x16xf32>
    %1 = arith.truncf %0 : vector<16x16xf32> to vector<16x16xbf16>
    %c0_1 = arith.constant 0 : index
    %c0_2 = arith.constant 0 : index
    %2 = vector.load %arg3[%c0_1, %c0_2] : memref<16x32xbf16, #tpu.memory_space<vmem>>, vector<16x32xbf16>
    %cst = arith.constant dense<0.000000e+00> : vector<16x32xf32>
    %3 = tpu.matmul %1, %2, %cst {dimension_numbers = #tpu.dot_dimension_numbers<[1], [0], [0], [1], [0, 0, 1, 1], [], []>} : vector<16x16xbf16>, vector<16x32xbf16>, vector<16x32xf32> -> vector<16x32xf32>
    %c0_3 = arith.constant 0 : index
    %c0_4 = arith.constant 0 : index
    %4 = vector.load %arg4[%c0_3, %c0_4] : memref<1x32xf32, #tpu.memory_space<vmem>>, vector<1x32xf32>
    %5 = vector.broadcast %4 : vector<1x32xf32> to vector<16x32xf32>
    %6 = arith.addf %3, %5 : vector<16x32xf32>
    %7 = arith.truncf %6 : vector<16x32xf32> to vector<16x32xbf16>
    %c0_5 = arith.constant 0 : index
    %c0_6 = arith.constant 0 : index
    %8 = vector.load %arg5[%c0_5, %c0_6] : memref<32x32xbf16, #tpu.memory_space<vmem>>, vector<32x32xbf16>
    %cst_7 = arith.constant dense<0.000000e+00> : vector<16x32xf32>
    %9 = tpu.matmul %7, %8, %cst_7 {dimension_numbers = #tpu.dot_dimension_numbers<[1], [0], [0], [1], [0, 0, 1, 1], [], []>} : vector<16x32xbf16>, vector<32x32xbf16>, vector<16x32xf32> -> vector<16x32xf32>
    %c0_8 = arith.constant 0 : index
    %c0_9 = arith.constant 0 : index
    %10 = vector.load %arg2[%c0_8, %c0_9] : memref<16x32xf32, #tpu.memory_space<vmem>>, vector<16x32xf32>
    %11 = arith.addf %9, %10 : vector<16x32xf32>
    %cst_10 = arith.constant 0.000000e+00 : f32
    %12 = vector.broadcast %cst_10 : f32 to vector<16x32xf32>
    %13 = arith.maximumf %11, %12 : vector<16x32xf32>
    %14 = arith.truncf %13 : vector<16x32xf32> to vector<16x32xbf16>
    %c0_11 = arith.constant 0 : index
    %c0_12 = arith.constant 0 : index
    %15 = vector.load %arg6[%c0_11, %c0_12] : memref<32x32xbf16, #tpu.memory_space<vmem>>, vector<32x32xbf16>
    %cst_13 = arith.constant dense<0.000000e+00> : vector<16x32xf32>
    %16 = tpu.matmul %14, %15, %cst_13 {dimension_numbers = #tpu.dot_dimension_numbers<[1], [0], [0], [1], [0, 0, 1, 1], [], []>} : vector<16x32xbf16>, vector<32x32xbf16>, vector<16x32xf32> -> vector<16x32xf32>
    %c0_14 = arith.constant 0 : index
    %c0_15 = arith.constant 0 : index
    %17 = vector.load %arg7[%c0_14, %c0_15] : memref<1x32xf32, #tpu.memory_space<vmem>>, vector<1x32xf32>
    %18 = vector.broadcast %17 : vector<1x32xf32> to vector<16x32xf32>
    %19 = arith.addf %16, %18 : vector<16x32xf32>
    %c0_16 = arith.constant 0 : index
    %c0_17 = arith.constant 0 : index
    %20 = vector.load %arg8[%c0_16, %c0_17] : memref<16x32xf32, #tpu.memory_space<vmem>>, vector<16x32xf32>
    tpu.vector_store %arg8[%c0_16, %c0_17], %19 {strides = array<i32>} : memref<16x32xf32, #tpu.memory_space<vmem>>, vector<16x32xf32>,
    return
  }
  func.func @transform_0(%arg0: i32) -> (i32, i32) {
    %c0_i32 = arith.constant 0 : i32
    %c0_i32_0 = arith.constant 0 : i32
    return %arg0, %c0_i32 : i32, i32
  }
  func.func @transform_1(%arg0: i32) -> (i32, i32) {
    %c0_i32 = arith.constant 0 : i32
    %c0_i32_0 = arith.constant 0 : i32
    return %arg0, %c0_i32 : i32, i32
  }
  func.func @transform_2(%arg0: i32) -> (i32, i32) {
    %c0_i32 = arith.constant 0 : i32
    %c0_i32_0 = arith.constant 0 : i32
    %c0_i32_1 = arith.constant 0 : i32
    return %c0_i32, %c0_i32_0 : i32, i32
  }
  func.func @transform_3(%arg0: i32) -> (i32, i32) {
    %c0_i32 = arith.constant 0 : i32
    %c0_i32_0 = arith.constant 0 : i32
    %c0_i32_1 = arith.constant 0 : i32
    return %c0_i32, %c0_i32_0 : i32, i32
  }
  func.func @transform_4(%arg0: i32) -> (i32, i32) {
    %c0_i32 = arith.constant 0 : i32
    %c0_i32_0 = arith.constant 0 : i32
    %c0_i32_1 = arith.constant 0 : i32
    return %c0_i32, %c0_i32_0 : i32, i32
  }
  func.func @transform_5(%arg0: i32) -> (i32, i32) {
    %c0_i32 = arith.constant 0 : i32
    %c0_i32_0 = arith.constant 0 : i32
    %c0_i32_1 = arith.constant 0 : i32
    return %c0_i32, %c0_i32_0 : i32, i32
  }
  func.func @transform_6(%arg0: i32) -> (i32, i32) {
    %c0_i32 = arith.constant 0 : i32
    %c0_i32_0 = arith.constant 0 : i32
    %c0_i32_1 = arith.constant 0 : i32
    return %c0_i32, %c0_i32_0 : i32, i32
  }
  func.func @transform_7(%arg0: i32) -> (i32, i32) {
    %c0_i32 = arith.constant 0 : i32
    %c0_i32_0 = arith.constant 0 : i32
    return %arg0, %c0_i32 : i32, i32
  }
}

</mosaic_0001>

<llo_original>
// kernel: tpu_custom_call.1
$region0: #{tpu_custom_call.1}
  #allocation0 [shape = 'u32[]', space=smem, size = 0x4, offset = 0x4, fixed_abs, tag = 'smem constant byte address 0x4 - core index']
  #allocation1 [shape = 'u32[144,128]{1,0:T(1,128)}', space=vmem, size = 0x12000, scoped, tag = 'internal scratch']
  %s0 = inlined_call_operand.hbm [shape: f32[16,16], index: 0, kind: input, shape index: {}]
  %s1 = inlined_call_operand.hbm [shape: f32[16,32], index: 1, kind: input, shape index: {}]
  %s2 = inlined_call_operand.hbm [shape: bf16[16,32], index: 2, kind: input, shape index: {}]
  %s3 = inlined_call_operand.vmem [shape: f32[1,32], index: 3, kind: input, shape index: {}]
  %s4 = inlined_call_operand.hbm [shape: bf16[32,32], index: 4, kind: input, shape index: {}]
  %s5 = inlined_call_operand.hbm [shape: bf16[32,32], index: 5, kind: input, shape index: {}]
  %s6 = inlined_call_operand.vmem [shape: f32[1,32], index: 6, kind: input, shape index: {}]
  %s7 = inlined_call_operand.hbm [shape: f32[16,32], index: 7, kind: output, shape index: {}]
  %s8 = sld [smem:[#allocation0]]
  $region58: #{tpu_custom_call.1} parent=0
    _
  %s10 = ssub.s32 1, %s8
  %s11 = scalar_select 0, %s10, %s8
  $region1: #{tpu_custom_call.1} parent=0
    #allocation2 [shape = 'u8[8192]{0}', space=vmem, size = 0x2000, scoped, tag = 'input window, operand 0, single buffered']
    #allocation3 [shape = 's32[1]{0}', space=sflag, size = 0x4, scoped, tag = 'scoped memory for tpu_custom_call.1']
    #allocation4 [shape = 's32[1]{0}', space=sflag, size = 0x4, scoped, tag = 'scoped memory for tpu_custom_call.1']
    #allocation5 [shape = 'u8[8192]{0}', space=vmem, size = 0x2000, scoped, tag = 'input window, operand 1, single buffered']
    #allocation6 [shape = 's32[1]{0}', space=sflag, size = 0x4, scoped, tag = 'scoped memory for tpu_custom_call.1']
    #allocation7 [shape = 'u8[4096]{0}', space=vmem, size = 0x1000, scoped, tag = 'input window, operand 2, single buffered']
    #allocation8 [shape = 'u8[8192]{0}', space=vmem, size = 0x2000, scoped, tag = 'input window, operand 4, single buffered']
    #allocation9 [shape = 's32[1]{0}', space=sflag, size = 0x4, scoped, tag = 'scoped memory for tpu_custom_call.1']
    #allocation10 [shape = 'u8[8192]{0}', space=vmem, size = 0x2000, scoped, tag = 'input window, operand 5, single buffered']
    #allocation11 [shape = 'u8[8192]{0}', space=vmem, size = 0x2000, scoped, tag = 'output window, operand 0, single buffered']
    %12 = vsyncpa [#allocation3], 0
    %13 = vsyncpa [#allocation6], 0
    %14 = vsyncpa [#allocation9], 0
    %15 = vsyncpa [#allocation4], 0
    // Predicated region
    $region2: #{tpu_custom_call.1} parent=1 // pred_check
      _
    $region3: #{tpu_custom_call.1} parent=1 // pred_check_branch
      %17 = sbr.rel (0) target = $region5
    $region4: #{tpu_custom_call.1} parent=1 // pred_region
      %s19 = ssub.s32 256, 256
      %20 = vsyncadd [#allocation3], %s19
      %s21 = sshll.u32 [#allocation2], 4
      %s22 = int_to_ptr.vmem [resolvable:$true] %s21
      %27 = dma.hbm_to_vmem [thread:$0]  %s0, 256, %s22, [#allocation3], 128, 128, 8
    $region5: #{tpu_custom_call.1} parent=1 // pred_fallthru
      _
    // Predicated region
    $region6: #{tpu_custom_call.1} parent=1 // pred_check
      _
    $region7: #{tpu_custom_call.1} parent=1 // pred_check_branch
      %29 = sbr.rel (0) target = $region9
    $region8: #{tpu_custom_call.1} parent=1 // pred_region
      %s31 = ssub.s32 256, 256
      %32 = vsyncadd [#allocation6], %s31
      %s33 = sshll.u32 [#allocation5], 4
      %s34 = int_to_ptr.vmem [resolvable:$true] %s33
      %39 = dma.hbm_to_vmem [thread:$0]  %s1, 256, %s34, [#allocation6], 128, 128, 8
    $region9: #{tpu_custom_call.1} parent=1 // pred_fallthru
      _
    // Predicated region
    $region10: #{tpu_custom_call.1} parent=1 // pred_check
      _
    $region11: #{tpu_custom_call.1} parent=1 // pred_check_branch
      %41 = sbr.rel (0) target = $region13
    $region12: #{tpu_custom_call.1} parent=1 // pred_region
      %s43 = ssub.s32 128, 128
      %44 = vsyncadd [#allocation6], %s43
      %s45 = sshll.u32 [#allocation7], 4
      %s46 = int_to_ptr.vmem [resolvable:$true] %s45
      %51 = dma.hbm_to_vmem [thread:$0]  %s2, 128, %s46, [#allocation6], 64, 64, 4
    $region13: #{tpu_custom_call.1} parent=1 // pred_fallthru
      _
    // Predicated region
    $region14: #{tpu_custom_call.1} parent=1 // pred_check
      _
    $region15: #{tpu_custom_call.1} parent=1 // pred_check_branch
      %53 = sbr.rel (0) target = $region17
    $region16: #{tpu_custom_call.1} parent=1 // pred_region
      _
    $region17: #{tpu_custom_call.1} parent=1 // pred_fallthru
      _
    // Predicated region
    $region18: #{tpu_custom_call.1} parent=1 // pred_check
      _
    $region19: #{tpu_custom_call.1} parent=1 // pred_check_branch
      %55 = sbr.rel (0) target = $region21
    $region20: #{tpu_custom_call.1} parent=1 // pred_region
      %s57 = ssub.s32 256, 256
      %58 = vsyncadd [#allocation9], %s57
      %s59 = sshll.u32 [#allocation8], 4
      %s60 = int_to_ptr.vmem [resolvable:$true] %s59
      %65 = dma.hbm_to_vmem [thread:$0]  %s4, 256, %s60, [#allocation9], 64, 64, 4
    $region21: #{tpu_custom_call.1} parent=1 // pred_fallthru
      _
    // Predicated region
    $region22: #{tpu_custom_call.1} parent=1 // pred_check
      _
    $region23: #{tpu_custom_call.1} parent=1 // pred_check_branch
      %67 = sbr.rel (0) target = $region25
    $region24: #{tpu_custom_call.1} parent=1 // pred_region
      %s69 = ssub.s32 256, 256
      %70 = vsyncadd [#allocation9], %s69
      %s71 = sshll.u32 [#allocation10], 4
      %s72 = int_to_ptr.vmem [resolvable:$true] %s71
      %77 = dma.hbm_to_vmem [thread:$0]  %s5, 256, %s72, [#allocation9], 64, 64, 4
    $region25: #{tpu_custom_call.1} parent=1 // pred_fallthru
      _
    // Predicated region
    $region26: #{tpu_custom_call.1} parent=1 // pred_check
      _
    $region27: #{tpu_custom_call.1} parent=1 // pred_check_branch
      %79 = sbr.rel (0) target = $region29
    $region28: #{tpu_custom_call.1} parent=1 // pred_region
      _
    $region29: #{tpu_custom_call.1} parent=1 // pred_fallthru
      _
    // Predicated region
    $region30: #{tpu_custom_call.1} parent=1 // pred_check
      _
    $region31: #{tpu_custom_call.1} parent=1 // pred_check_branch
      %81 = sbr.rel (0) target = $region33
    $region32: #{tpu_custom_call.1} parent=1 // pred_region
      %82 = dma.done [#allocation3], 256
    $region33: #{tpu_custom_call.1} parent=1 // pred_fallthru
      _
    // Predicated region
    $region34: #{tpu_custom_call.1} parent=1 // pred_check
      _
    $region35: #{tpu_custom_call.1} parent=1 // pred_check_branch
      %84 = sbr.rel (0) target = $region37
    $region36: #{tpu_custom_call.1} parent=1 // pred_region
      %85 = dma.done [#allocation6], 256
    $region37: #{tpu_custom_call.1} parent=1 // pred_fallthru
      _
    // Predicated region
    $region38: #{tpu_custom_call.1} parent=1 // pred_check
      _
    $region39: #{tpu_custom_call.1} parent=1 // pred_check_branch
      %87 = sbr.rel (0) target = $region41
    $region40: #{tpu_custom_call.1} parent=1 // pred_region
      %88 = dma.done [#allocation6], 128
    $region41: #{tpu_custom_call.1} parent=1 // pred_fallthru
      _
    // Predicated region
    $region42: #{tpu_custom_call.1} parent=1 // pred_check
      _
    $region43: #{tpu_custom_call.1} parent=1 // pred_check_branch
      %90 = sbr.rel (0) target = $region45
    $region44: #{tpu_custom_call.1} parent=1 // pred_region
      %91 = dma.done [#allocation9], 256
    $region45: #{tpu_custom_call.1} parent=1 // pred_fallthru
      _
    // Predicated region
    $region46: #{tpu_custom_call.1} parent=1 // pred_check
      _
    $region47: #{tpu_custom_call.1} parent=1 // pred_check_branch
      %93 = sbr.rel (0) target = $region49
    $region48: #{tpu_custom_call.1} parent=1 // pred_region
      %94 = dma.done [#allocation9], 256
    $region49: #{tpu_custom_call.1} parent=1 // pred_fallthru
      _
    %v96 = vld [vmem:[#allocation2] sm:$0xff]
    %v97 = vld [vmem:[#allocation2 + $0x8] sm:$0xff]
    %v98 = vpack.c.bf16 %v97, %v96
    %v99 = vld [vmem:[#allocation7] sm:$0xf]
    %v100 = vld [vmem:[#allocation7 + $0x4] sm:$0xf]
    %v101 = vld [vmem:[%s3] sm:$0x1]
    %v103 = vlaneseq
    %v104 = vshrl.u32 %v103, 7
    %v105 = vsub.s32 0, %v104
    %v106 = vrot.slane %v101, %v105
    %v110 = vunpack.c.l.b16 %v99
    %v111 = vunpack.c.l.b16 %v100
    %v112 = vpack.c.b16 %v111, %v110
    %vm114 = vcmask 130048
    %v116 = vsel %vm114, %v98, 0
    %118 = vmatprep.subr.bf16.mxu0 0
    %119 = vmatpush1.bf16.msra.mxu0 0
    %120 = vmatprep.subr.bf16.mxu0 0
    %121 = vmatpush1.bf16.msra.mxu0 0
    %122 = vmatprep.subr.bf16.mxu0 0
    %123 = vmatpush1.bf16.msra.mxu0 0
    %124 = vmatprep.subr.bf16.mxu0 0
    %125 = vmatpush1.bf16.msra.mxu0 0
    %126 = vmatprep.subr.bf16.mxu0 0
    %127 = vmatpush1.bf16.msra.mxu0 0
    %128 = vmatprep.subr.bf16.mxu0 0
    %129 = vmatpush1.bf16.msra.mxu0 0
    %130 = vmatprep.subr.bf16.mxu0 0
    %131 = vmatpush1.bf16.msra.mxu0 0
    %132 = vmatprep.subr.bf16.mxu0 0
    %133 = vmatpush1.bf16.msra.mxu0 %v112
    %134 = vmatprep.subr.bf16.mxu0 0
    %135 = vmatpush2.bf16.msra.mxu0 0
    %136 = vmatprep.subr.bf16.mxu0 0
    %137 = vmatpush2.bf16.msra.mxu0 0
    %138 = vmatprep.subr.bf16.mxu0 0
    %139 = vmatpush2.bf16.msra.mxu0 0
    %140 = vmatprep.subr.bf16.mxu0 0
    %141 = vmatpush2.bf16.msra.mxu0 0
    %142 = vmatprep.subr.bf16.mxu0 0
    %143 = vmatpush2.bf16.msra.mxu0 0
    %144 = vmatprep.subr.bf16.mxu0 0
    %145 = vmatpush2.bf16.msra.mxu0 0
    %146 = vmatprep.subr.bf16.mxu0 0
    %147 = vmatpush2.bf16.msra.mxu0 0
    %148 = vmatprep.subr.bf16.mxu0 0
    %149 = vmatpush2.bf16.msra.mxu0 0
    %150 = vmatprep.mubr.bf16.mxu0 0
    %151 = vmatmul.mubr.bf16.gmra.mxu0 %v116
    %v152 = vpop.f32.mrf.mxu0
    %v153 = vadd.f32 %v106, %v152
    %v154 = vpop.f32.mrf.mxu0
    %v155 = vpop.f32.mrf.mxu0
    %v156 = vadd.f32 %v106, %v155
    %v157 = vpop.f32.mrf.mxu0
    %158 = vdwg.mxu0
    %v159 = vpack.c.bf16 %v156, %v153
    %v160 = vld [vmem:[#allocation8] sm:$0xf]
    %v161 = vld [vmem:[#allocation8 + $0x4] sm:$0xf]
    %v162 = vld [vmem:[#allocation8 + $0x8] sm:$0xf]
    %v163 = vld [vmem:[#allocation8 + $0xc] sm:$0xf]
    %v164 = vld [vmem:[#allocation5] sm:$0xff]
    %v165 = vld [vmem:[#allocation5 + $0x8] sm:$0xff]
    %v170 = vunpack.c.l.b16 %v160
    %v171 = vunpack.c.l.b16 %v161
    %v172 = vunpack.c.l.b16 %v162
    %v173 = vunpack.c.l.b16 %v163
    %v174 = vpack.c.b16 %v171, %v170
    %v175 = vpack.c.b16 %v173, %v172
    %vm178 = vcmask 261120
    %v180 = vsel %vm178, %v159, 0
    %182 = vmatprep.subr.bf16.mxu0 0
    %183 = vmatpush1.bf16.msra.mxu0 0
    %184 = vmatprep.subr.bf16.mxu0 0
    %185 = vmatpush1.bf16.msra.mxu0 0
    %186 = vmatprep.subr.bf16.mxu0 0
    %187 = vmatpush1.bf16.msra.mxu0 0
    %188 = vmatprep.subr.bf16.mxu0 0
    %189 = vmatpush1.bf16.msra.mxu0 0
    %190 = vmatprep.subr.bf16.mxu0 0
    %191 = vmatpush1.bf16.msra.mxu0 0
    %192 = vmatprep.subr.bf16.mxu0 0
    %193 = vmatpush1.bf16.msra.mxu0 0
    %194 = vmatprep.subr.bf16.mxu0 0
    %195 = vmatpush1.bf16.msra.mxu0 %v175
    %196 = vmatprep.subr.bf16.mxu0 0
    %197 = vmatpush1.bf16.msra.mxu0 %v174
    %198 = vmatprep.subr.bf16.mxu0 0
    %199 = vmatpush2.bf16.msra.mxu0 0
    %200 = vmatprep.subr.bf16.mxu0 0
    %201 = vmatpush2.bf16.msra.mxu0 0
    %202 = vmatprep.subr.bf16.mxu0 0
    %203 = vmatpush2.bf16.msra.mxu0 0
    %204 = vmatprep.subr.bf16.mxu0 0
    %205 = vmatpush2.bf16.msra.mxu0 0
    %206 = vmatprep.subr.bf16.mxu0 0
    %207 = vmatpush2.bf16.msra.mxu0 0
    %208 = vmatprep.subr.bf16.mxu0 0
    %209 = vmatpush2.bf16.msra.mxu0 0
    %210 = vmatprep.subr.bf16.mxu0 0
    %211 = vmatpush2.bf16.msra.mxu0 0
    %212 = vmatprep.subr.bf16.mxu0 0
    %213 = vmatpush2.bf16.msra.mxu0 0
    %214 = vmatprep.mubr.bf16.mxu0 0
    %215 = vmatmul.mubr.bf16.gmra.mxu0 %v180
    %v216 = vpop.f32.mrf.mxu0
    %v217 = vadd.f32 %v164, %v216
    %v218 = vpop.f32.mrf.mxu0
    %v219 = vpop.f32.mrf.mxu0
    %v220 = vadd.f32 %v165, %v219
    %v221 = vpop.f32.mrf.mxu0
    %222 = vdwg.mxu0
    %v223 = vmax.f32 %v217, 0.0
    %v224 = vmax.f32 %v220, 0.0
    %v225 = vpack.c.bf16 %v224, %v223
    %v226 = vld [vmem:[#allocation10] sm:$0xf]
    %v227 = vld [vmem:[#allocation10 + $0x4] sm:$0xf]
    %v228 = vld [vmem:[#allocation10 + $0x8] sm:$0xf]
    %v229 = vld [vmem:[#allocation10 + $0xc] sm:$0xf]
    %v230 = vld [vmem:[%s6] sm:$0x1]
    %v232 = vlaneseq
    %v233 = vshrl.u32 %v232, 7
    %v234 = vsub.s32 0, %v233
    %v235 = vrot.slane %v230, %v234
    %v241 = vunpack.c.l.b16 %v226
    %v242 = vunpack.c.l.b16 %v227
    %v243 = vunpack.c.l.b16 %v228
    %v244 = vunpack.c.l.b16 %v229
    %v245 = vpack.c.b16 %v242, %v241
    %v246 = vpack.c.b16 %v244, %v243
    %v250 = vsel %vm178, %v225, 0
    %252 = vmatprep.subr.bf16.mxu0 0
    %253 = vmatpush1.bf16.msra.mxu0 0
    %254 = vmatprep.subr.bf16.mxu0 0
    %255 = vmatpush1.bf16.msra.mxu0 0
    %256 = vmatprep.subr.bf16.mxu0 0
    %257 = vmatpush1.bf16.msra.mxu0 0
    %258 = vmatprep.subr.bf16.mxu0 0
    %259 = vmatpush1.bf16.msra.mxu0 0
    %260 = vmatprep.subr.bf16.mxu0 0
    %261 = vmatpush1.bf16.msra.mxu0 0
    %262 = vmatprep.subr.bf16.mxu0 0
    %263 = vmatpush1.bf16.msra.mxu0 0
    %264 = vmatprep.subr.bf16.mxu0 0
    %265 = vmatpush1.bf16.msra.mxu0 %v246
    %266 = vmatprep.subr.bf16.mxu0 0
    %267 = vmatpush1.bf16.msra.mxu0 %v245
    %268 = vmatprep.subr.bf16.mxu0 0
    %269 = vmatpush2.bf16.msra.mxu0 0
    %270 = vmatprep.subr.bf16.mxu0 0
    %271 = vmatpush2.bf16.msra.mxu0 0
    %272 = vmatprep.subr.bf16.mxu0 0
    %273 = vmatpush2.bf16.msra.mxu0 0
    %274 = vmatprep.subr.bf16.mxu0 0
    %275 = vmatpush2.bf16.msra.mxu0 0
    %276 = vmatprep.subr.bf16.mxu0 0
    %277 = vmatpush2.bf16.msra.mxu0 0
    %278 = vmatprep.subr.bf16.mxu0 0
    %279 = vmatpush2.bf16.msra.mxu0 0
    %280 = vmatprep.subr.bf16.mxu0 0
    %281 = vmatpush2.bf16.msra.mxu0 0
    %282 = vmatprep.subr.bf16.mxu0 0
    %283 = vmatpush2.bf16.msra.mxu0 0
    %284 = vmatprep.mubr.bf16.mxu0 0
    %285 = vmatmul.mubr.bf16.gmra.mxu0 %v250
    %v286 = vpop.f32.mrf.mxu0
    %v287 = vadd.f32 %v235, %v286
    %v288 = vpop.f32.mrf.mxu0
    %v289 = vpop.f32.mrf.mxu0
    %v290 = vadd.f32 %v235, %v289
    %v291 = vpop.f32.mrf.mxu0
    %292 = vdwg.mxu0
    %293 = vst.msk [vmem:[#allocation11] sm:$0xff] %vm178, %v287
    %294 = vst.msk [vmem:[#allocation11 + $0x8] sm:$0xff] %vm178, %v290
    // Predicated region
    $region50: #{tpu_custom_call.1} parent=1 // pred_check
      _
    $region51: #{tpu_custom_call.1} parent=1 // pred_check_branch
      %296 = sbr.rel (0) target = $region53
    $region52: #{tpu_custom_call.1} parent=1 // pred_region
      %s298 = ssub.s32 256, 256
      %299 = vsyncadd [#allocation4], %s298
      %s300 = sshll.u32 [#allocation11], 4
      %s301 = int_to_ptr.vmem [resolvable:$true] %s300
      %306 = dma.vmem_to_hbm [thread:$0]  %s301, 256, %s7, [#allocation4], 128, 128, 8
    $region53: #{tpu_custom_call.1} parent=1 // pred_fallthru
      _
    // Predicated region
    $region54: #{tpu_custom_call.1} parent=1 // pred_check
      _
    $region55: #{tpu_custom_call.1} parent=1 // pred_check_branch
      %308 = sbr.rel (0) target = $region57
    $region56: #{tpu_custom_call.1} parent=1 // pred_region
      %309 = dma.done [#allocation4], 256
    $region57: #{tpu_custom_call.1} parent=1 // pred_fallthru
      _
    %310 = vsyncpa [#allocation3], 1
    %311 = vsyncpa [#allocation6], 1
    %312 = vsyncpa [#allocation9], 1
    %313 = vsyncpa [#allocation4], 1

</llo_original>
